<compile_context>
chip_gen: v7x
topology: tpu7x:2x2x1
jax: 0.10.0
libtpu: 0.0.40
codegen_flags: <defaults>
</compile_context>

<pallas_src>
import functools

import jax
import jax.numpy as jnp
from jax.experimental import pallas as pl
from jax.experimental.pallas import tpu as pltpu

IN_DIM = 100
HID_DIM = 64
FEAT_DIM = 16
OUT_DIM = 2


def _mlp_kernel(x_ref, w1_ref, b1_ref, w2_ref, b2_ref, y_ref):
    # Layer 1: Linear(100, 64) + ReLU. In-kernel bf16 cast feeds the MXU;
    # bias-add / ReLU / accumulation stay in f32.
    x = x_ref[...].astype(jnp.bfloat16)
    h = jnp.dot(x, w1_ref[...], preferred_element_type=jnp.float32)
    h = jnp.maximum(h + b1_ref[...], 0.0)
    # Second (possibly classifier-folded) Linear: [64,16] features or [64,2] logits.
    y = jnp.dot(h.astype(w2_ref.dtype), w2_ref[...],
                preferred_element_type=jnp.float32)
    y_ref[...] = (y + b2_ref[...]).astype(y_ref.dtype)


def _round_up(n, m):
    return ((n + m - 1) // m) * m


def _fused_mlp(x, w1, b1, w2, b2, block_b):
    """x:[B,100] f32, w1:[100,64], b1:[1,64], w2:[64,N], b2:[1,N] -> [B,N] f32."""
    B = x.shape[0]
    n_out = w2.shape[1]

    # Batch tile: multiple of 8, clamped for small B. Ragged tail handled by
    # Pallas boundary masking (no padding, no output slice).
    tb = min(block_b, _round_up(max(B, 8), 8))
    grid = (pl.cdiv(B, tb),)

    const = lambda shape: pl.BlockSpec(shape, lambda i: (0, 0))  # VMEM-resident weights

    flops = 2 * B * (IN_DIM * HID_DIM + HID_DIM * n_out)
    bytes_accessed = (B * (IN_DIM + n_out) * 4
                      + (IN_DIM * HID_DIM + HID_DIM * n_out) * 2
                      + (HID_DIM + n_out) * 4)

    return pl.pallas_call(
        _mlp_kernel,
        out_shape=jax.ShapeDtypeStruct((B, n_out), jnp.float32),
        grid=grid,
        in_specs=[
            pl.BlockSpec((tb, IN_DIM), lambda i: (i, 0)),   # pipelined f32 x tile
            const((IN_DIM, HID_DIM)),
            const((1, HID_DIM)),
            const((HID_DIM, n_out)),
            const((1, n_out)),
        ],
        out_specs=pl.BlockSpec((tb, n_out), lambda i: (i, 0)),
        compiler_params=pltpu.CompilerParams(
            dimension_semantics=("parallel",),          # v7x megacore splits batch grid
            vmem_limit_bytes=64 * 1024 * 1024),         # headroom for tb=8192 on v5e
        cost_estimate=pl.CostEstimate(
            flops=flops, transcendentals=0, bytes_accessed=bytes_accessed),
    )(x,
      w1.astype(jnp.bfloat16), b1.astype(jnp.float32),
      w2.astype(jnp.bfloat16), b2.astype(jnp.float32))


@functools.partial(jax.jit, static_argnames=("return_features", "block_b"))
def classical_nn_forward(x, params, return_features=False, block_b=8192):
    """API-compatible with ClassicalNN.forward (one fused kernel either way)."""
    if return_features:
        w2, b2 = params["w2"], params["b2"]                  # [64,16] features head
    else:
        # Fold the classifier into the feature head: one [64,2] matmul, 8 B/row store.
        w2 = params["w2"] @ params["w3"]                     # [64, 2]
        b2 = params["b2"] @ params["w3"] + params["b3"]      # [1, 2]
    return _fused_mlp(x, params["w1"], params["b1"], w2, b2, block_b)


def init_params(key):
    """Deterministic init mimicking torch.nn.Linear default (U[-1/sqrt(fan_in), ...])."""
    ks = jax.random.split(key, 6)

    def lin(kw, kb, fan_in, fan_out):
        bound = 1.0 / jnp.sqrt(fan_in)
        # stored as [in, out] (pre-transposed vs torch's [out, in])
        w = jax.random.uniform(kw, (fan_in, fan_out), jnp.float32, -bound, bound)
        b = jax.random.uniform(kb, (1, fan_out), jnp.float32, -bound, bound)
        return w, b

    w1, b1 = lin(ks[0], ks[1], IN_DIM, HID_DIM)
    w2, b2 = lin(ks[2], ks[3], HID_DIM, FEAT_DIM)
    w3, b3 = lin(ks[4], ks[5], FEAT_DIM, OUT_DIM)
    return {"w1": w1, "b1": b1, "w2": w2, "b2": b2, "w3": w3, "b3": b3}


def _reference(x, p):
    h = jnp.maximum(x @ p["w1"] + p["b1"], 0.0)
    f = h @ p["w2"] + p["b2"]
    return f @ p["w3"] + p["b3"], f


if __name__ == "__main__":
    key = jax.random.PRNGKey(0)
    k_x, k_p = jax.random.split(key)
    params = init_params(k_p)

    # Small deterministic check, plus a ragged batch (37) that exercises the
    # cdiv-grid boundary masking path (no padding, no output slice).
    for B in (32, 37):
        x = jax.random.normal(jax.random.fold_in(k_x, B), (B, IN_DIM), jnp.float32)

        logits = classical_nn_forward(x, params)                       # [B, 2]
        feats = classical_nn_forward(x, params, return_features=True)  # [B, 16]
        jax.block_until_ready(logits)
        jax.block_until_ready(feats)

        ref_logits, ref_feats = _reference(x, params)
        assert logits.shape == (B, OUT_DIM)
        assert feats.shape == (B, FEAT_DIM)
        # bf16 MXU inputs with f32 accumulation -> modest tolerance vs f32 reference.
        assert jnp.allclose(logits, ref_logits, atol=2e-2, rtol=2e-2)
        assert jnp.allclose(feats, ref_feats, atol=2e-2, rtol=2e-2)

    print("KERNEL_OK")
</pallas_src>

<mosaic_0001>
module attributes {stable_mosaic.version = 11 : i64} {
  func.func @_mlp_kernel(%arg0: i32, %arg1: memref<32x100xf32, #tpu.memory_space<vmem>>, %arg2: memref<100x64xbf16, #tpu.memory_space<vmem>>, %arg3: memref<1x64xf32, #tpu.memory_space<vmem>>, %arg4: memref<64x2xbf16, #tpu.memory_space<vmem>>, %arg5: memref<1x2xf32, #tpu.memory_space<vmem>>, %arg6: memref<32x2xf32, #tpu.memory_space<vmem>>) attributes {dimension_semantics = [#tpu.dimension_semantics<parallel>], iteration_bounds = array<i64: 1>, scalar_prefetch = 0 : i64, scratch_operands = 0 : i64, tpu.core_type = #tpu.core_type<tc>, window_params = [{transform_indices = @transform_0, window_bounds = array<i64: 32, 100>}, {pipeline_mode = #tpu.pipeline_mode<synchronous>, transform_indices = @transform_1, window_bounds = array<i64: 100, 64>}, {pipeline_mode = #tpu.pipeline_mode<synchronous>, transform_indices = @transform_2, window_bounds = array<i64: 1, 64>}, {pipeline_mode = #tpu.pipeline_mode<synchronous>, transform_indices = @transform_3, window_bounds = array<i64: 64, 2>}, {pipeline_mode = #tpu.pipeline_mode<synchronous>, transform_indices = @transform_4, window_bounds = array<i64: 1, 2>}, {transform_indices = @transform_5, window_bounds = array<i64: 32, 2>}]} {
    %c0 = arith.constant 0 : index
    %c0_0 = arith.constant 0 : index
    %0 = vector.load %arg1[%c0, %c0_0] : memref<32x100xf32, #tpu.memory_space<vmem>>, vector<32x100xf32>
    %1 = arith.truncf %0 : vector<32x100xf32> to vector<32x100xbf16>
    %c0_1 = arith.constant 0 : index
    %c0_2 = arith.constant 0 : index
    %2 = vector.load %arg2[%c0_1, %c0_2] : memref<100x64xbf16, #tpu.memory_space<vmem>>, vector<100x64xbf16>
    %cst = arith.constant dense<0.000000e+00> : vector<32x64xf32>
    %3 = tpu.matmul %1, %2, %cst {dimension_numbers = #tpu.dot_dimension_numbers<[1], [0], [0], [1], [0, 0, 1, 1], [], []>} : vector<32x100xbf16>, vector<100x64xbf16>, vector<32x64xf32> -> vector<32x64xf32>
    %c0_3 = arith.constant 0 : index
    %c0_4 = arith.constant 0 : index
    %4 = vector.load %arg3[%c0_3, %c0_4] : memref<1x64xf32, #tpu.memory_space<vmem>>, vector<1x64xf32>
    %5 = vector.broadcast %4 : vector<1x64xf32> to vector<32x64xf32>
    %6 = arith.addf %3, %5 : vector<32x64xf32>
    %cst_5 = arith.constant 0.000000e+00 : f32
    %7 = vector.broadcast %cst_5 : f32 to vector<32x64xf32>
    %8 = arith.maximumf %6, %7 : vector<32x64xf32>
    %9 = arith.truncf %8 : vector<32x64xf32> to vector<32x64xbf16>
    %c0_6 = arith.constant 0 : index
    %c0_7 = arith.constant 0 : index
    %10 = vector.load %arg4[%c0_6, %c0_7] : memref<64x2xbf16, #tpu.memory_space<vmem>>, vector<64x2xbf16>
    %cst_8 = arith.constant dense<0.000000e+00> : vector<32x2xf32>
    %11 = tpu.matmul %9, %10, %cst_8 {dimension_numbers = #tpu.dot_dimension_numbers<[1], [0], [0], [1], [0, 0, 1, 1], [], []>} : vector<32x64xbf16>, vector<64x2xbf16>, vector<32x2xf32> -> vector<32x2xf32>
    %c0_9 = arith.constant 0 : index
    %c0_10 = arith.constant 0 : index
    %12 = vector.load %arg5[%c0_9, %c0_10] : memref<1x2xf32, #tpu.memory_space<vmem>>, vector<1x2xf32>
    %13 = vector.broadcast %12 : vector<1x2xf32> to vector<32x2xf32>
    %14 = arith.addf %11, %13 : vector<32x2xf32>
    %c0_11 = arith.constant 0 : index
    %c0_12 = arith.constant 0 : index
    %15 = vector.load %arg6[%c0_11, %c0_12] : memref<32x2xf32, #tpu.memory_space<vmem>>, vector<32x2xf32>
    tpu.vector_store %arg6[%c0_11, %c0_12], %14 {strides = array<i32>} : memref<32x2xf32, #tpu.memory_space<vmem>>, vector<32x2xf32>,
    return
  }
  func.func @transform_0(%arg0: i32) -> (i32, i32) {
    %c0_i32 = arith.constant 0 : i32
    %c0_i32_0 = arith.constant 0 : i32
    return %arg0, %c0_i32 : i32, i32
  }
  func.func @transform_1(%arg0: i32) -> (i32, i32) {
    %c0_i32 = arith.constant 0 : i32
    %c0_i32_0 = arith.constant 0 : i32
    %c0_i32_1 = arith.constant 0 : i32
    return %c0_i32, %c0_i32_0 : i32, i32
  }
  func.func @transform_2(%arg0: i32) -> (i32, i32) {
    %c0_i32 = arith.constant 0 : i32
    %c0_i32_0 = arith.constant 0 : i32
    %c0_i32_1 = arith.constant 0 : i32
    return %c0_i32, %c0_i32_0 : i32, i32
  }
  func.func @transform_3(%arg0: i32) -> (i32, i32) {
    %c0_i32 = arith.constant 0 : i32
    %c0_i32_0 = arith.constant 0 : i32
    %c0_i32_1 = arith.constant 0 : i32
    return %c0_i32, %c0_i32_0 : i32, i32
  }
  func.func @transform_4(%arg0: i32) -> (i32, i32) {
    %c0_i32 = arith.constant 0 : i32
    %c0_i32_0 = arith.constant 0 : i32
    %c0_i32_1 = arith.constant 0 : i32
    return %c0_i32, %c0_i32_0 : i32, i32
  }
  func.func @transform_5(%arg0: i32) -> (i32, i32) {
    %c0_i32 = arith.constant 0 : i32
    %c0_i32_0 = arith.constant 0 : i32
    return %arg0, %c0_i32 : i32, i32
  }
}

</mosaic_0001>

<llo_original>
// kernel: classical_nn_forward.1
$region0: #{classical_nn_forward.1}
  #allocation0 [shape = 'u32[]', space=smem, size = 0x4, offset = 0x4, fixed_abs, tag = 'smem constant byte address 0x4 - core index']
  #allocation1 [shape = 'u32[144,128]{1,0:T(1,128)}', space=vmem, size = 0x12000, scoped, tag = 'internal scratch']
  %s0 = inlined_call_operand.hbm [shape: f32[32,100], index: 0, kind: input, shape index: {}]
  %s1 = inlined_call_operand.hbm [shape: bf16[100,64], index: 1, kind: input, shape index: {}]
  %s2 = inlined_call_operand.hbm [shape: f32[1,64], index: 2, kind: input, shape index: {}]
  %s3 = inlined_call_operand.hbm [shape: bf16[64,2], index: 3, kind: input, shape index: {}]
  %s4 = inlined_call_operand.hbm [shape: f32[1,2], index: 4, kind: input, shape index: {}]
  %s5 = inlined_call_operand.hbm [shape: f32[32,2], index: 5, kind: output, shape index: {}]
  %s6 = sld [smem:[#allocation0]]
  $region50: #{classical_nn_forward.1} parent=0
    _
  %s8 = ssub.s32 1, %s6
  %s9 = scalar_select 0, %s8, %s6
  $region1: #{classical_nn_forward.1} parent=0
    #allocation2 [shape = 'u8[16384]{0}', space=vmem, size = 0x4000, scoped, tag = 'input window, operand 0, single buffered']
    #allocation3 [shape = 's32[1]{0}', space=sflag, size = 0x4, scoped, tag = 'scoped memory for classical_nn_forward.1']
    #allocation4 [shape = 's32[1]{0}', space=sflag, size = 0x4, scoped, tag = 'scoped memory for classical_nn_forward.1']
    #allocation5 [shape = 'u8[26624]{0}', space=vmem, size = 0x6800, scoped, tag = 'input window, operand 1, single buffered']
    #allocation6 [shape = 's32[1]{0}', space=sflag, size = 0x4, scoped, tag = 'scoped memory for classical_nn_forward.1']
    #allocation7 [shape = 'u8[512]{0}', space=vmem, size = 0x400, scoped, tag = 'input window, operand 2, single buffered']
    #allocation8 [shape = 'u8[16384]{0}', space=vmem, size = 0x4000, scoped, tag = 'input window, operand 3, single buffered']
    #allocation9 [shape = 's32[1]{0}', space=sflag, size = 0x4, scoped, tag = 'scoped memory for classical_nn_forward.1']
    #allocation10 [shape = 'u8[512]{0}', space=vmem, size = 0x400, scoped, tag = 'input window, operand 4, single buffered']
    #allocation11 [shape = 'u8[16384]{0}', space=vmem, size = 0x4000, scoped, tag = 'output window, operand 0, single buffered']
    %10 = vsyncpa [#allocation3], 0
    %11 = vsyncpa [#allocation6], 0
    %12 = vsyncpa [#allocation9], 0
    %13 = vsyncpa [#allocation4], 0
    // Predicated region
    $region2: #{classical_nn_forward.1} parent=1 // pred_check
      _
    $region3: #{classical_nn_forward.1} parent=1 // pred_check_branch
      %15 = sbr.rel (0) target = $region5
    $region4: #{classical_nn_forward.1} parent=1 // pred_region
      %s17 = ssub.s32 512, 512
      %18 = vsyncadd [#allocation3], %s17
      %s19 = sshll.u32 [#allocation2], 4
      %s20 = int_to_ptr.vmem [resolvable:$true] %s19
      %25 = dma.hbm_to_vmem [thread:$0]  %s0, 512, %s20, [#allocation3], 128, 128, 8
    $region5: #{classical_nn_forward.1} parent=1 // pred_fallthru
      _
    // Predicated region
    $region6: #{classical_nn_forward.1} parent=1 // pred_check
      _
    $region7: #{classical_nn_forward.1} parent=1 // pred_check_branch
      %27 = sbr.rel (0) target = $region9
    $region8: #{classical_nn_forward.1} parent=1 // pred_region
      %s29 = ssub.s32 832, 832
      %30 = vsyncadd [#allocation6], %s29
      %s31 = sshll.u32 [#allocation5], 4
      %s32 = int_to_ptr.vmem [resolvable:$true] %s31
      %37 = dma.hbm_to_vmem [thread:$0]  %s1, 832, %s32, [#allocation6], 64, 64, 4
    $region9: #{classical_nn_forward.1} parent=1 // pred_fallthru
      _
    // Predicated region
    $region10: #{classical_nn_forward.1} parent=1 // pred_check
      _
    $region11: #{classical_nn_forward.1} parent=1 // pred_check_branch
      %39 = sbr.rel (0) target = $region13
    $region12: #{classical_nn_forward.1} parent=1 // pred_region
      %s41 = ssub.s32 16, 16
      %42 = vsyncadd [#allocation6], %s41
      %s44 = sshll.u32 [#allocation7], 4
      %s45 = int_to_ptr.vmem [resolvable:$true] %s44
      %47 = dma.hbm_to_vmem [thread:$0]  %s2, 16, %s45, [#allocation6]
    $region13: #{classical_nn_forward.1} parent=1 // pred_fallthru
      _
    // Predicated region
    $region14: #{classical_nn_forward.1} parent=1 // pred_check
      _
    $region15: #{classical_nn_forward.1} parent=1 // pred_check_branch
      %49 = sbr.rel (0) target = $region17
    $region16: #{classical_nn_forward.1} parent=1 // pred_region
      %s51 = ssub.s32 512, 512
      %52 = vsyncadd [#allocation9], %s51
      %s53 = sshll.u32 [#allocation8], 4
      %s54 = int_to_ptr.vmem [resolvable:$true] %s53
      %59 = dma.hbm_to_vmem [thread:$0]  %s3, 512, %s54, [#allocation9], 64, 64, 4
    $region17: #{classical_nn_forward.1} parent=1 // pred_fallthru
      _
    // Predicated region
    $region18: #{classical_nn_forward.1} parent=1 // pred_check
      _
    $region19: #{classical_nn_forward.1} parent=1 // pred_check_branch
      %61 = sbr.rel (0) target = $region21
    $region20: #{classical_nn_forward.1} parent=1 // pred_region
      %s63 = ssub.s32 16, 16
      %64 = vsyncadd [#allocation9], %s63
      %s66 = sshll.u32 [#allocation10], 4
      %s67 = int_to_ptr.vmem [resolvable:$true] %s66
      %69 = dma.hbm_to_vmem [thread:$0]  %s4, 16, %s67, [#allocation9]
    $region21: #{classical_nn_forward.1} parent=1 // pred_fallthru
      _
    // Predicated region
    $region22: #{classical_nn_forward.1} parent=1 // pred_check
      _
    $region23: #{classical_nn_forward.1} parent=1 // pred_check_branch
      %71 = sbr.rel (0) target = $region25
    $region24: #{classical_nn_forward.1} parent=1 // pred_region
      %72 = dma.done [#allocation3], 512
    $region25: #{classical_nn_forward.1} parent=1 // pred_fallthru
      _
    // Predicated region
    $region26: #{classical_nn_forward.1} parent=1 // pred_check
      _
    $region27: #{classical_nn_forward.1} parent=1 // pred_check_branch
      %74 = sbr.rel (0) target = $region29
    $region28: #{classical_nn_forward.1} parent=1 // pred_region
      %75 = dma.done [#allocation6], 832
    $region29: #{classical_nn_forward.1} parent=1 // pred_fallthru
      _
    // Predicated region
    $region30: #{classical_nn_forward.1} parent=1 // pred_check
      _
    $region31: #{classical_nn_forward.1} parent=1 // pred_check_branch
      %77 = sbr.rel (0) target = $region33
    $region32: #{classical_nn_forward.1} parent=1 // pred_region
      %78 = dma.done [#allocation6], 16
    $region33: #{classical_nn_forward.1} parent=1 // pred_fallthru
      _
    // Predicated region
    $region34: #{classical_nn_forward.1} parent=1 // pred_check
      _
    $region35: #{classical_nn_forward.1} parent=1 // pred_check_branch
      %80 = sbr.rel (0) target = $region37
    $region36: #{classical_nn_forward.1} parent=1 // pred_region
      %81 = dma.done [#allocation9], 512
    $region37: #{classical_nn_forward.1} parent=1 // pred_fallthru
      _
    // Predicated region
    $region38: #{classical_nn_forward.1} parent=1 // pred_check
      _
    $region39: #{classical_nn_forward.1} parent=1 // pred_check_branch
      %83 = sbr.rel (0) target = $region41
    $region40: #{classical_nn_forward.1} parent=1 // pred_region
      %84 = dma.done [#allocation9], 16
    $region41: #{classical_nn_forward.1} parent=1 // pred_fallthru
      _
    %v86 = vld [vmem:[#allocation2] sm:$0xff]
    %v87 = vld [vmem:[#allocation2 + $0x8] sm:$0xff]
    %v88 = vld [vmem:[#allocation2 + $0x10] sm:$0xff]
    %v89 = vld [vmem:[#allocation2 + $0x18] sm:$0xff]
    %v90 = vpack.c.bf16 %v87, %v86
    %v91 = vpack.c.bf16 %v89, %v88
    %v92 = vld [vmem:[#allocation5] sm:$0xf]
    %v93 = vld [vmem:[#allocation5 + $0x4] sm:$0xf]
    %v94 = vld [vmem:[#allocation5 + $0x8] sm:$0xf]
    %v95 = vld [vmem:[#allocation5 + $0xc] sm:$0xf]
    %v96 = vld [vmem:[#allocation5 + $0x10] sm:$0xf]
    %v97 = vld [vmem:[#allocation5 + $0x14] sm:$0xf]
    %v98 = vld [vmem:[#allocation5 + $0x18] sm:$0xf]
    %v99 = vld [vmem:[#allocation5 + $0x1c] sm:$0xf]
    %v100 = vld [vmem:[#allocation5 + $0x20] sm:$0xf]
    %v101 = vld [vmem:[#allocation5 + $0x24] sm:$0xf]
    %v102 = vld [vmem:[#allocation5 + $0x28] sm:$0xf]
    %v103 = vld [vmem:[#allocation5 + $0x2c] sm:$0xf]
    %v104 = vld [vmem:[#allocation5 + $0x30] sm:$0x3]
    %v105 = vld [vmem:[#allocation7] sm:$0x1]
    %v107 = vlaneseq
    %v108 = vshrl.u32 %v107, 7
    %v109 = vsub.s32 0, %v108
    %v110 = vrot.slane %v105, %v109
    %v125 = vunpack.c.l.b16 %v92
    %v126 = vunpack.c.l.b16 %v93
    %v127 = vunpack.c.l.b16 %v94
    %v128 = vunpack.c.l.b16 %v95
    %v129 = vunpack.c.l.b16 %v96
    %v130 = vunpack.c.l.b16 %v97
    %v131 = vunpack.c.l.b16 %v98
    %v132 = vunpack.c.l.b16 %v99
    %v133 = vunpack.c.l.b16 %v100
    %v134 = vunpack.c.l.b16 %v101
    %v135 = vunpack.c.l.b16 %v102
    %v136 = vunpack.c.l.b16 %v103
    %v137 = vunpack.c.l.b16 %v104
    %v138 = vpack.c.b16 %v126, %v125
    %v139 = vpack.c.b16 %v128, %v127
    %v140 = vpack.c.b16 %v130, %v129
    %v141 = vpack.c.b16 %v132, %v131
    %v142 = vpack.c.b16 %v134, %v133
    %v143 = vpack.c.b16 %v136, %v135
    %v144 = vpack.c.b16 %v137, %v137
    %vm151 = vcmask 818176
    %v153 = vsel %vm151, %v90, 0
    %v156 = vsel %vm151, %v91, 0
    %vm158 = vcmask 1041408
    %v160 = vsel %vm158, %v144, 0
    %162 = vmatprep.subr.bf16.mxu0 0
    %163 = vmatpush1.bf16.msra.mxu0 %v138
    %164 = vmatprep.subr.bf16.mxu0 0
    %165 = vmatpush1.bf16.msra.mxu0 %v139
    %166 = vmatprep.subr.bf16.mxu0 0
    %167 = vmatpush1.bf16.msra.mxu0 %v140
    %168 = vmatprep.subr.bf16.mxu0 0
    %169 = vmatpush1.bf16.msra.mxu0 %v141
    %170 = vmatprep.subr.bf16.mxu0 0
    %171 = vmatpush1.bf16.msra.mxu0 %v142
    %172 = vmatprep.subr.bf16.mxu0 0
    %173 = vmatpush1.bf16.msra.mxu0 %v143
    %174 = vmatprep.subr.bf16.mxu0 0
    %175 = vmatpush1.bf16.msra.mxu0 %v160
    %176 = vmatprep.subr.bf16.mxu0 0
    %177 = vmatpush1.bf16.msra.mxu0 0
    %178 = vmatprep.subr.bf16.mxu0 0
    %179 = vmatpush1.bf16.msra.mxu0 0
    %180 = vmatprep.subr.bf16.mxu0 0
    %181 = vmatpush1.bf16.msra.mxu0 0
    %182 = vmatprep.subr.bf16.mxu0 0
    %183 = vmatpush1.bf16.msra.mxu0 0
    %184 = vmatprep.subr.bf16.mxu0 0
    %185 = vmatpush1.bf16.msra.mxu0 0
    %186 = vmatprep.subr.bf16.mxu0 0
    %187 = vmatpush1.bf16.msra.mxu0 0
    %188 = vmatprep.subr.bf16.mxu0 0
    %189 = vmatpush1.bf16.msra.mxu0 0
    %190 = vmatprep.subr.bf16.mxu0 0
    %191 = vmatpush1.bf16.msra.mxu0 0
    %192 = vmatprep.subr.bf16.mxu0 0
    %193 = vmatpush1.bf16.msra.mxu0 0
    %194 = vmatprep.mubr.bf16.mxu0 0
    %195 = vmatmul.mubr.bf16.gmra.mrb[0].mxu0 %v153
    %v196 = vpop.f32.mrb[0].mxu0
    %v197 = vadd.f32 %v110, %v196
    %v198 = vpop.f32.mrb[0].mxu0
    %v199 = vpop.f32.mrb[0].mxu0
    %v200 = vadd.f32 %v110, %v199
    %v201 = vpop.f32.mrb[0].mxu0
    %202 = vmatprep.mubr.bf16.mxu0 0
    %203 = vmatmul.mubr.bf16.gmra.mrb[0].mxu0 %v156
    %v204 = vpop.f32.mrb[0].mxu0
    %v205 = vadd.f32 %v110, %v204
    %v206 = vpop.f32.mrb[0].mxu0
    %v207 = vpop.f32.mrb[0].mxu0
    %v208 = vadd.f32 %v110, %v207
    %v209 = vpop.f32.mrb[0].mxu0
    %210 = vdwg.mxu0
    %v211 = vmax.f32 %v197, 0.0
    %v212 = vmax.f32 %v200, 0.0
    %v213 = vmax.f32 %v205, 0.0
    %v214 = vmax.f32 %v208, 0.0
    %v215 = vpack.c.bf16 %v212, %v211
    %v216 = vpack.c.bf16 %v214, %v213
    %v217 = vld [vmem:[#allocation8] sm:$0xf]
    %v218 = vld [vmem:[#allocation8 + $0x4] sm:$0xf]
    %v219 = vld [vmem:[#allocation8 + $0x8] sm:$0xf]
    %v220 = vld [vmem:[#allocation8 + $0xc] sm:$0xf]
    %v221 = vld [vmem:[#allocation8 + $0x10] sm:$0xf]
    %v222 = vld [vmem:[#allocation8 + $0x14] sm:$0xf]
    %v223 = vld [vmem:[#allocation8 + $0x18] sm:$0xf]
    %v224 = vld [vmem:[#allocation8 + $0x1c] sm:$0xf]
    %v225 = vld [vmem:[#allocation10] sm:$0x1]
    %v227 = vlaneseq
    %v228 = vshrl.u32 %v227, 7
    %v229 = vsub.s32 0, %v228
    %v230 = vrot.slane %v225, %v229
    %v240 = vunpack.c.l.b16 %v217
    %v241 = vunpack.c.l.b16 %v218
    %v242 = vunpack.c.l.b16 %v219
    %v243 = vunpack.c.l.b16 %v220
    %v244 = vunpack.c.l.b16 %v221
    %v245 = vunpack.c.l.b16 %v222
    %v246 = vunpack.c.l.b16 %v223
    %v247 = vunpack.c.l.b16 %v224
    %v248 = vpack.c.b16 %v241, %v240
    %v249 = vpack.c.b16 %v243, %v242
    %v250 = vpack.c.b16 %v245, %v244
    %v251 = vpack.c.b16 %v247, %v246
    %vm256 = vcmask 523264
    %v258 = vsel %vm256, %v215, 0
    %v261 = vsel %vm256, %v216, 0
    %263 = vmatprep.subr.bf16.mxu0 0
    %264 = vmatpush1.bf16.msra.mxu0 %v248
    %265 = vmatprep.subr.bf16.mxu0 0
    %266 = vmatpush1.bf16.msra.mxu0 %v249
    %267 = vmatprep.subr.bf16.mxu0 0
    %268 = vmatpush1.bf16.msra.mxu0 %v250
    %269 = vmatprep.subr.bf16.mxu0 0
    %270 = vmatpush1.bf16.msra.mxu0 %v251
    %271 = vmatprep.subr.bf16.mxu0 0
    %272 = vmatpush1.bf16.msra.mxu0 0
    %273 = vmatprep.subr.bf16.mxu0 0
    %274 = vmatpush1.bf16.msra.mxu0 0
    %275 = vmatprep.subr.bf16.mxu0 0
    %276 = vmatpush1.bf16.msra.mxu0 0
    %277 = vmatprep.subr.bf16.mxu0 0
    %278 = vmatpush1.bf16.msra.mxu0 0
    %279 = vmatprep.subr.bf16.mxu0 0
    %280 = vmatpush1.bf16.msra.mxu0 0
    %281 = vmatprep.subr.bf16.mxu0 0
    %282 = vmatpush1.bf16.msra.mxu0 0
    %283 = vmatprep.subr.bf16.mxu0 0
    %284 = vmatpush1.bf16.msra.mxu0 0
    %285 = vmatprep.subr.bf16.mxu0 0
    %286 = vmatpush1.bf16.msra.mxu0 0
    %287 = vmatprep.subr.bf16.mxu0 0
    %288 = vmatpush1.bf16.msra.mxu0 0
    %289 = vmatprep.subr.bf16.mxu0 0
    %290 = vmatpush1.bf16.msra.mxu0 0
    %291 = vmatprep.subr.bf16.mxu0 0
    %292 = vmatpush1.bf16.msra.mxu0 0
    %293 = vmatprep.subr.bf16.mxu0 0
    %294 = vmatpush1.bf16.msra.mxu0 0
    %295 = vmatprep.mubr.bf16.mxu0 0
    %296 = vmatmul.mubr.bf16.gmra.mrb[0].mxu0 %v258
    %v297 = vpop.f32.mrb[0].mxu0
    %v298 = vadd.f32 %v230, %v297
    %v299 = vpop.f32.mrb[0].mxu0
    %v300 = vpop.f32.mrb[0].mxu0
    %v301 = vadd.f32 %v230, %v300
    %v302 = vpop.f32.mrb[0].mxu0
    %303 = vmatprep.mubr.bf16.mxu0 0
    %304 = vmatmul.mubr.bf16.gmra.mrb[0].mxu0 %v261
    %v305 = vpop.f32.mrb[0].mxu0
    %v306 = vadd.f32 %v230, %v305
    %v307 = vpop.f32.mrb[0].mxu0
    %v308 = vpop.f32.mrb[0].mxu0
    %v309 = vadd.f32 %v230, %v308
    %v310 = vpop.f32.mrb[0].mxu0
    %311 = vdwg.mxu0
    %vm312 = vcmask 15360
    %313 = vst.msk [vmem:[#allocation11] sm:$0xff] %vm312, %v298
    %314 = vst.msk [vmem:[#allocation11 + $0x8] sm:$0xff] %vm312, %v301
    %315 = vst.msk [vmem:[#allocation11 + $0x10] sm:$0xff] %vm312, %v306
    %316 = vst.msk [vmem:[#allocation11 + $0x18] sm:$0xff] %vm312, %v309
    // Predicated region
    $region42: #{classical_nn_forward.1} parent=1 // pred_check
      _
    $region43: #{classical_nn_forward.1} parent=1 // pred_check_branch
      %318 = sbr.rel (0) target = $region45
    $region44: #{classical_nn_forward.1} parent=1 // pred_region
      %s320 = ssub.s32 512, 512
      %321 = vsyncadd [#allocation4], %s320
      %s322 = sshll.u32 [#allocation11], 4
      %s323 = int_to_ptr.vmem [resolvable:$true] %s322
      %328 = dma.vmem_to_hbm [thread:$0]  %s323, 512, %s5, [#allocation4], 128, 128, 8
    $region45: #{classical_nn_forward.1} parent=1 // pred_fallthru
      _
    // Predicated region
    $region46: #{classical_nn_forward.1} parent=1 // pred_check
      _
    $region47: #{classical_nn_forward.1} parent=1 // pred_check_branch
      %330 = sbr.rel (0) target = $region49
    $region48: #{classical_nn_forward.1} parent=1 // pred_region
      %331 = dma.done [#allocation4], 512
    $region49: #{classical_nn_forward.1} parent=1 // pred_fallthru
      _
    %332 = vsyncpa [#allocation3], 1
    %333 = vsyncpa [#allocation6], 1
    %334 = vsyncpa [#allocation9], 1
    %335 = vsyncpa [#allocation4], 1

</llo_original>
